<compile_context>
chip_gen: v6e
topology: v6e:2x2x1
jax: 0.10.0
libtpu: 0.0.40
codegen_flags: <defaults>
</compile_context>

<pallas_src>
import jax
import jax.numpy as jnp
from jax.experimental import pallas as pl
from jax.experimental.pallas import tpu as pltpu

GAMMA = 2.0   # baked in: (1-y)^2 computed as a plain multiply, not jnp.power
EPS = 1e-07


def _focal_loss_kernel(preds_ref, target_ref, weight_ref, out_ref):
    # preds_ref/target_ref: (BLK_R, BLK_L) tile; weight_ref: (BLK_R, 1);
    # out_ref: (1, 1) SMEM partial sum for the current lane tile (grid axis 0).
    j = pl.program_id(1)   # row-tile (reduction) axis, innermost

    @pl.when(j == 0)
    def _():
        out_ref[0, 0] = jnp.float32(0.0)

    y = preds_ref[...].astype(jnp.float32)
    t = target_ref[...].astype(jnp.float32)
    w = weight_ref[...].astype(jnp.float32)            # (BLK_R, 1)

    one_m = 1.0 - y
    # ce = -log(y + eps) * t ; floss = (1 - y)^2 * ce   (gamma == 2)
    fl = (one_m * one_m) * (-jnp.log(y + EPS)) * t     # (BLK_R, BLK_L)
    # Weighted sum of the tile: sum_r w_r * sum_l fl[r, l]
    # (same result as sum(fl * w) with far fewer VPU multiplies).
    row_sums = jnp.sum(fl, axis=1, keepdims=True)      # (BLK_R, 1)
    out_ref[0, 0] += jnp.sum(row_sums * w)


def _round_up(x, m):
    return (x + m - 1) // m * m


def focal_loss(preds, labels, weight, gamma=GAMMA, blk_r=None, blk_l=None):
    """Focal loss matching the PyTorch Focal_Loss.forward.

    preds, labels: (N, C, H, W); preds already softmax'd over C.
    weight: (C,) per-class weights.  Returns a scalar f32 loss.
    preds/labels may be f32 or bf16 (cast to f32 inside the kernel).
    """
    assert gamma == GAMMA, "gamma=2 is baked into the kernel (explicit square)"
    N, C = preds.shape[0], preds.shape[1]
    L = 1
    for d in preds.shape[2:]:
        L *= d

    # Flatten to (N*C, L); per-row weight = weight[class of that row].
    R = N * C
    preds2 = preds.reshape(R, L)
    labels2 = labels.reshape(R, L)
    w_rows = jnp.tile(weight.astype(jnp.float32).reshape(C), N).reshape(R, 1)

    # Tile sizes: multiples of (8, 128); <= (256, 2048) keeps the
    # double-buffered working set of both input streams under ~8 MiB.
    if blk_r is None:
        blk_r = min(_round_up(R, 8), 256)
    if blk_l is None:
        blk_l = min(_round_up(L, 128), 2048)

    r_pad = _round_up(R, blk_r)
    l_pad = _round_up(L, blk_l)
    if (r_pad, l_pad) != (R, L):
        # Zero-padded labels contribute exactly 0 to the sum; the final
        # division below uses the true N*L, so the mean is unbiased.
        preds2 = jnp.pad(preds2, ((0, r_pad - R), (0, l_pad - L)))
        labels2 = jnp.pad(labels2, ((0, r_pad - R), (0, l_pad - L)))
        w_rows = jnp.pad(w_rows, ((0, r_pad - R), (0, 0)))

    n_lane_tiles = l_pad // blk_l
    n_row_tiles = r_pad // blk_r

    partials = pl.pallas_call(
        _focal_loss_kernel,
        out_shape=jax.ShapeDtypeStruct((n_lane_tiles, 1), jnp.float32),
        grid=(n_lane_tiles, n_row_tiles),
        in_specs=[
            pl.BlockSpec((blk_r, blk_l), lambda i, j: (j, i)),
            pl.BlockSpec((blk_r, blk_l), lambda i, j: (j, i)),
            pl.BlockSpec((blk_r, 1), lambda i, j: (j, 0)),
        ],
        out_specs=pl.BlockSpec((1, 1), lambda i, j: (i, 0),
                               memory_space=pltpu.SMEM),
        compiler_params=pltpu.CompilerParams(
            dimension_semantics=("parallel", "arbitrary"),
            vmem_limit_bytes=32 * 1024 * 1024,
        ),
    )(preds2, labels2, w_rows)

    return jnp.sum(partials) * (1.0 / (N * L))


def focal_loss_ref(preds, labels, weight, gamma=GAMMA):
    # Pure-JAX reference mirroring the PyTorch forward exactly.
    N, C = preds.shape[0], preds.shape[1]
    y = preds.reshape(N, C, -1).astype(jnp.float32)
    t = labels.reshape(y.shape).astype(jnp.float32)
    ce = -jnp.log(y + EPS) * t
    fl = jnp.power(1.0 - y, gamma) * ce
    fl = fl * weight.reshape(C, 1).astype(jnp.float32)
    fl = jnp.sum(fl, axis=1)
    return jnp.mean(fl)


def _make_case(key, N, C, H, W):
    k1, k2, k3 = jax.random.split(key, 3)
    logits = jax.random.normal(k1, (N, C, H, W), dtype=jnp.float32)
    preds = jax.nn.softmax(logits, axis=1)                       # NCHW softmax
    cls = jax.random.randint(k2, (N, H, W), 0, C)
    labels = jax.nn.one_hot(cls, C, axis=1, dtype=jnp.float32)   # (N, C, H, W)
    weight = jax.random.uniform(k3, (C,), minval=0.5, maxval=2.0,
                                dtype=jnp.float32)
    return preds, labels, weight


if __name__ == "__main__":
    key = jax.random.PRNGKey(0)
    k0, k1, k2 = jax.random.split(key, 3)

    # Case 1: aligned shapes (single tile).
    p, lab, w = _make_case(k0, 2, 4, 16, 16)
    out = jax.block_until_ready(focal_loss(p, lab, w))
    ref = focal_loss_ref(p, lab, w)
    assert jnp.allclose(out, ref, rtol=1e-5, atol=1e-6), (out, ref)

    # Case 2: non-aligned shapes (exercises zero-padding path).
    p, lab, w = _make_case(k1, 2, 3, 15, 17)
    out = jax.block_until_ready(focal_loss(p, lab, w))
    ref = focal_loss_ref(p, lab, w)
    assert jnp.allclose(out, ref, rtol=1e-5, atol=1e-6), (out, ref)

    # Case 3: multi-tile grid (exercises the running-sum accumulator and the
    # parallel lane-tile axis with per-tile partial outputs).
    p, lab, w = _make_case(k2, 4, 8, 16, 32)
    out = jax.block_until_ready(focal_loss(p, lab, w, blk_r=8, blk_l=128))
    ref = focal_loss_ref(p, lab, w)
    assert jnp.allclose(out, ref, rtol=1e-5, atol=1e-6), (out, ref)

    print("KERNEL_OK")
</pallas_src>

<mosaic_0001>
module attributes {stable_mosaic.version = 11 : i64} {
  func.func @_focal_loss_kernel(%arg0: i32, %arg1: i32, %arg2: memref<8x256xf32, #tpu.memory_space<vmem>>, %arg3: memref<8x256xf32, #tpu.memory_space<vmem>>, %arg4: memref<8x1xf32, #tpu.memory_space<vmem>>, %arg5: memref<1x1xf32, #tpu.memory_space<smem>>) attributes {dimension_semantics = [#tpu.dimension_semantics<parallel>, #tpu.dimension_semantics<arbitrary>], iteration_bounds = array<i64: 1, 1>, scalar_prefetch = 0 : i64, scratch_operands = 0 : i64, tpu.core_type = #tpu.core_type<tc>, window_params = [{transform_indices = @transform_0, window_bounds = array<i64: 8, 256>}, {transform_indices = @transform_1, window_bounds = array<i64: 8, 256>}, {transform_indices = @transform_2, window_bounds = array<i64: 8, 1>}, {transform_indices = @transform_3, window_bounds = array<i64: 1, 1>}]} {
    %c0_i32 = arith.constant 0 : i32
    %0 = arith.cmpi eq, %arg1, %c0_i32 : i32
    %1 = arith.extui %0 : i1 to i32
    %c0_i32_0 = arith.constant 0 : i32
    %2 = arith.cmpi ne, %1, %c0_i32_0 : i32
    scf.if %2 {
      %cst_14 = arith.constant 0.000000e+00 : f32
      %c0_15 = arith.constant 0 : index
      %c0_16 = arith.constant 0 : index
      %26 = memref.load %arg5[%c0_15, %c0_16] : memref<1x1xf32, #tpu.memory_space<smem>>
      memref.store %cst_14, %arg5[%c0_15, %c0_16] : memref<1x1xf32, #tpu.memory_space<smem>>
    } else {
    }
    %c0 = arith.constant 0 : index
    %c0_1 = arith.constant 0 : index
    %3 = vector.load %arg2[%c0, %c0_1] : memref<8x256xf32, #tpu.memory_space<vmem>>, vector<8x256xf32>
    %c0_2 = arith.constant 0 : index
    %c0_3 = arith.constant 0 : index
    %4 = vector.load %arg3[%c0_2, %c0_3] : memref<8x256xf32, #tpu.memory_space<vmem>>, vector<8x256xf32>
    %c0_4 = arith.constant 0 : index
    %c0_5 = arith.constant 0 : index
    %5 = vector.load %arg4[%c0_4, %c0_5] : memref<8x1xf32, #tpu.memory_space<vmem>>, vector<8x1xf32>
    %cst = arith.constant 1.000000e+00 : f32
    %6 = vector.broadcast %cst : f32 to vector<8x256xf32>
    %7 = arith.subf %6, %3 : vector<8x256xf32>
    %8 = arith.mulf %7, %7 : vector<8x256xf32>
    %cst_6 = arith.constant 1.000000e-07 : f32
    %9 = vector.broadcast %cst_6 : f32 to vector<8x256xf32>
    %10 = arith.addf %3, %9 : vector<8x256xf32>
    %11 = math.log %10 : vector<8x256xf32>
    %cst_7 = arith.constant 0.000000e+00 : f32
    %12 = vector.broadcast %cst_7 : f32 to vector<8x256xf32>
    %13 = arith.subf %12, %11 : vector<8x256xf32>
    %14 = arith.mulf %8, %13 : vector<8x256xf32>
    %15 = arith.mulf %14, %4 : vector<8x256xf32>
    %cst_8 = arith.constant dense<0.000000e+00> : vector<8xf32>
    %16 = vector.multi_reduction <add>, %15, %cst_8 [1] : vector<8x256xf32> to vector<8xf32>
    %17 = vector.shape_cast %16 : vector<8xf32> to vector<8x1xf32>
    %c0_9 = arith.constant 0 : index
    %c0_10 = arith.constant 0 : index
    %18 = memref.load %arg5[%c0_9, %c0_10] : memref<1x1xf32, #tpu.memory_space<smem>>
    %19 = arith.mulf %17, %5 : vector<8x1xf32>
    %20 = vector.shape_cast %19 : vector<8x1xf32> to vector<1x8x1xf32>
    %cst_11 = arith.constant dense<0.000000e+00> : vector<1xf32>
    %21 = vector.multi_reduction <add>, %20, %cst_11 [1, 2] : vector<1x8x1xf32> to vector<1xf32>
    %22 = vector.shape_cast %21 : vector<1xf32> to vector<1x1x1xf32>
    %23 = vector.extract %22[0, 0, 0] : f32 from vector<1x1x1xf32>
    %24 = arith.addf %18, %23 : f32
    %c0_12 = arith.constant 0 : index
    %c0_13 = arith.constant 0 : index
    %25 = memref.load %arg5[%c0_12, %c0_13] : memref<1x1xf32, #tpu.memory_space<smem>>
    memref.store %24, %arg5[%c0_12, %c0_13] : memref<1x1xf32, #tpu.memory_space<smem>>
    return
  }
  func.func @transform_0(%arg0: i32, %arg1: i32) -> (i32, i32) {
    %c0_i32 = arith.constant 0 : i32
    return %arg1, %arg0 : i32, i32
  }
  func.func @transform_1(%arg0: i32, %arg1: i32) -> (i32, i32) {
    %c0_i32 = arith.constant 0 : i32
    return %arg1, %arg0 : i32, i32
  }
  func.func @transform_2(%arg0: i32, %arg1: i32) -> (i32, i32) {
    %c0_i32 = arith.constant 0 : i32
    %c0_i32_0 = arith.constant 0 : i32
    return %arg1, %c0_i32 : i32, i32
  }
  func.func @transform_3(%arg0: i32, %arg1: i32) -> (i32, i32) {
    %c0_i32 = arith.constant 0 : i32
    %c0_i32_0 = arith.constant 0 : i32
    return %arg0, %c0_i32 : i32, i32
  }
}

</mosaic_0001>

<llo_original>
// kernel: tpu_custom_call.1
$region0: #{tpu_custom_call.1}
  #allocation0 [shape = 'u32[]', space=smem, size = 0x4, offset = 0x4, fixed_abs, tag = 'smem constant byte address 0x4 - core index']
  #allocation1 [shape = 'u32[144,128]{1,0:T(1,128)}', space=vmem, size = 0x12000, scoped, tag = 'internal scratch']
  %s0 = inlined_call_operand.hbm [shape: f32[8,256], index: 0, kind: input, shape index: {}]
  %s1 = inlined_call_operand.hbm [shape: f32[8,256], index: 1, kind: input, shape index: {}]
  %s2 = inlined_call_operand.vmem [shape: f32[8,1], index: 2, kind: input, shape index: {}]
  %s3 = inlined_call_operand.hbm [shape: f32[1,1], index: 3, kind: output, shape index: {}]
  %s4 = sld [smem:[#allocation0]]
  $region34: #{tpu_custom_call.1} parent=0
    _
  %s6 = ssub.s32 1, %s4
  %s7 = scalar_select 0, %s6, %s4
  $region1: #{tpu_custom_call.1} parent=0
    #allocation2 [shape = 'u8[8192]{0}', space=vmem, size = 0x2000, scoped, tag = 'input window, operand 0, single buffered']
    #allocation3 [shape = 's32[1]{0}', space=sflag, size = 0x4, scoped, tag = 'scoped memory for tpu_custom_call.1']
    #allocation4 [shape = 's32[1]{0}', space=sflag, size = 0x4, scoped, tag = 'scoped memory for tpu_custom_call.1']
    #allocation5 [shape = 'u8[8192]{0}', space=vmem, size = 0x2000, scoped, tag = 'input window, operand 1, single buffered']
    #allocation6 [shape = 's32[1]{0}', space=sflag, size = 0x4, scoped, tag = 'scoped memory for tpu_custom_call.1']
    #allocation7 [shape = 'u8[512]{0}', space=smem, size = 0x200, scoped, tag = 'output window, operand 0, single buffered']
    %8 = vsyncpa [#allocation3], 0
    %9 = vsyncpa [#allocation6], 0
    %10 = vsyncpa [#allocation4], 0
    // Predicated region
    $region2: #{tpu_custom_call.1} parent=1 // pred_check
      _
    $region3: #{tpu_custom_call.1} parent=1 // pred_check_branch
      %12 = sbr.rel (0) target = $region5
    $region4: #{tpu_custom_call.1} parent=1 // pred_region
      %s14 = ssub.s32 256, 256
      %15 = vsyncadd [#allocation3], %s14
      %s17 = sshll.u32 [#allocation2], 4
      %s18 = int_to_ptr.vmem [resolvable:$true] %s17
      %20 = dma.hbm_to_vmem [thread:$0]  %s0, 256, %s18, [#allocation3]
    $region5: #{tpu_custom_call.1} parent=1 // pred_fallthru
      _
    // Predicated region
    $region6: #{tpu_custom_call.1} parent=1 // pred_check
      _
    $region7: #{tpu_custom_call.1} parent=1 // pred_check_branch
      %22 = sbr.rel (0) target = $region9
    $region8: #{tpu_custom_call.1} parent=1 // pred_region
      %s24 = ssub.s32 256, 256
      %25 = vsyncadd [#allocation6], %s24
      %s27 = sshll.u32 [#allocation5], 4
      %s28 = int_to_ptr.vmem [resolvable:$true] %s27
      %30 = dma.hbm_to_vmem [thread:$0]  %s1, 256, %s28, [#allocation6]
    $region9: #{tpu_custom_call.1} parent=1 // pred_fallthru
      _
    // Predicated region
    $region10: #{tpu_custom_call.1} parent=1 // pred_check
      _
    $region11: #{tpu_custom_call.1} parent=1 // pred_check_branch
      %32 = sbr.rel (0) target = $region13
    $region12: #{tpu_custom_call.1} parent=1 // pred_region
      _
    $region13: #{tpu_custom_call.1} parent=1 // pred_fallthru
      _
    // Predicated region
    $region14: #{tpu_custom_call.1} parent=1 // pred_check
      _
    $region15: #{tpu_custom_call.1} parent=1 // pred_check_branch
      %34 = sbr.rel (0) target = $region17
    $region16: #{tpu_custom_call.1} parent=1 // pred_region
      %35 = dma.done [#allocation3], 256
    $region17: #{tpu_custom_call.1} parent=1 // pred_fallthru
      _
    // Predicated region
    $region18: #{tpu_custom_call.1} parent=1 // pred_check
      _
    $region19: #{tpu_custom_call.1} parent=1 // pred_check_branch
      %37 = sbr.rel (0) target = $region21
    $region20: #{tpu_custom_call.1} parent=1 // pred_region
      %38 = dma.done [#allocation6], 256
    $region21: #{tpu_custom_call.1} parent=1 // pred_fallthru
      _
    %p39 = scmp.eq.s32.totalorder 0, 0
    // Predicated region
    $region22: #{tpu_custom_call.1} parent=1 // pred_check
      %p40 = pneg %p39
    $region23: #{tpu_custom_call.1} parent=1 // pred_check_branch
      %42 = sbr.rel (%p40) target = $region25
    $region24: #{tpu_custom_call.1} parent=1 // pred_region
      %s43 = scalar_lea.smem [#allocation7], 0
      %44 = sst [smem:[%s43]] 0.0
    $region25: #{tpu_custom_call.1} parent=1 // pred_fallthru
      _
    %v45 = vld [vmem:[#allocation2] sm:$0xff]
    %v46 = vld [vmem:[#allocation2 + $0x8] sm:$0xff]
    %v47 = vld [vmem:[#allocation5] sm:$0xff]
    %v48 = vld [vmem:[#allocation5 + $0x8] sm:$0xff]
    %v49 = vld [vmem:[%s2] sm:$0xff]
    %v50 = vsub.f32 1.0, %v45
    %v51 = vsub.f32 1.0, %v46
    %v52 = vmul.f32 %v50, %v50
    %v53 = vmul.f32 %v51, %v51
    %v54 = vadd.f32 %v45, 1e-07
    %v55 = vadd.f32 %v46, 1e-07
    %v56 = vlog2.pop %v54
    %v57 = vmul.f32 %v56, 0.6931472
    %v58 = vlog2.pop %v55
    %v59 = vmul.f32 %v58, 0.6931472
    %v60 = vsub.f32 0.0, %v57
    %v61 = vsub.f32 0.0, %v59
    %v62 = vmul.f32 %v52, %v60
    %v63 = vmul.f32 %v53, %v61
    %v64 = vmul.f32 %v62, %v47
    %v65 = vmul.f32 %v63, %v48
    %v66 = vadd.f32 %v64, %v65
    %67 = vadd.xlane.f32.xlu0 %v66
    %v68 = vpop.xlane.xlu0 %67
    %s69 = sld [smem:[#allocation7]]
    %v70 = vmul.f32 %v68, %v49
    %vm71 = vcmask 7168
    %v72 = vsel %vm71, %v70, 0.0
    %73 = vadd.xlane.f32.xlu0 %v72
    %v74 = vpop.xlane.xlu0 %73
    %v75 = vrot.slane %v74, 4
    %v76 = vadd.f32 %v74, %v75
    %v77 = vrot.slane %v76, 2
    %v78 = vadd.f32 %v76, %v77
    %v79 = vrot.slane %v78, 1
    %v80 = vadd.f32 %v78, %v79
    %s81 = vtos %v80
    %s82 = sadd.f32 %s69, %s81
    %s83 = scalar_lea.smem [#allocation7], 0
    %84 = sst [smem:[%s83]] %s82
    // Predicated region
    $region26: #{tpu_custom_call.1} parent=1 // pred_check
      _
    $region27: #{tpu_custom_call.1} parent=1 // pred_check_branch
      %86 = sbr.rel (0) target = $region29
    $region28: #{tpu_custom_call.1} parent=1 // pred_region
      %s88 = ssub.s32 16, 16
      %89 = vsyncadd [#allocation4], %s88
      %92 = dma.smem_to_hbm [#allocation7], 16, %s3, [#allocation4]
    $region29: #{tpu_custom_call.1} parent=1 // pred_fallthru
      _
    // Predicated region
    $region30: #{tpu_custom_call.1} parent=1 // pred_check
      _
    $region31: #{tpu_custom_call.1} parent=1 // pred_check_branch
      %94 = sbr.rel (0) target = $region33
    $region32: #{tpu_custom_call.1} parent=1 // pred_region
      %95 = dma.done [#allocation4], 16
    $region33: #{tpu_custom_call.1} parent=1 // pred_fallthru
      _
    %96 = sfence
    %97 = vsyncpa [#allocation3], 1
    %98 = vsyncpa [#allocation6], 1
    %99 = vsyncpa [#allocation4], 1

</llo_original>
